<compile_context>
chip_gen: v5e
topology: v5e:2x2
jax: 0.10.0
libtpu: 0.0.40
codegen_flags: <defaults>
</compile_context>

<pallas_src>
import jax
import jax.numpy as jnp
from jax import lax
from jax.experimental import pallas as pl
from jax.experimental.pallas import tpu as pltpu

N_EMBED = 32
NUM_EXPERTS = 8
TOP_K = 2


def router_kernel(x_ref, w_fused_ref, b_fused_ref, gauss_ref, router_ref, idx_ref):
    x = x_ref[...]                                                   # (n_embed, TM)

    # One fused matmul for both projections: (2E, n_embed) @ (n_embed, TM).
    fused = jnp.dot(w_fused_ref[...], x,
                    preferred_element_type=jnp.float32) + b_fused_ref[...]
    logits = fused[:NUM_EXPERTS, :]                                  # (E, TM)
    noise_logits = fused[NUM_EXPERTS:, :]                            # (E, TM)

    noise = gauss_ref[...] * jax.nn.softplus(noise_logits)
    noisy = logits + noise                                           # (E, TM)

    neg_inf = jnp.float32(-jnp.inf)
    expert_ids = lax.broadcasted_iota(jnp.int32, noisy.shape, 0)     # (E, TM)

    work = noisy
    sparse = jnp.full_like(noisy, neg_inf)
    idx_rows = []
    top1_max = None
    # Iterative top-k (top_k is small and static): pick max along the expert
    # (sublane) axis, record index (first occurrence on ties), mask out.
    for t in range(TOP_K):
        m = jnp.max(work, axis=0, keepdims=True)                     # (1, TM)
        if t == 0:
            top1_max = m                                             # reuse for softmax
        is_max = work == m
        idx = jnp.min(jnp.where(is_max, expert_ids, NUM_EXPERTS),
                      axis=0, keepdims=True)                         # (1, TM)
        sel = expert_ids == idx
        sparse = jnp.where(sel, noisy, sparse)
        work = jnp.where(sel, neg_inf, work)
        idx_rows.append(idx)

    idx_ref[...] = jnp.concatenate(idx_rows, axis=0).astype(jnp.int32)   # (top_k, TM)

    # Softmax over experts (axis 0).  Non-top-k entries are -inf -> exp() == 0.
    # top1_max is the overall max, so it is a valid stabilizer (no extra reduce).
    e = jnp.exp(sparse - top1_max)
    router_ref[...] = (e / jnp.sum(e, axis=0, keepdims=True)).astype(router_ref.dtype)


def noisy_topk_router(x_tokens, w_route, b_route, w_noise, b_noise, gauss, *, tm=2048):
    """x_tokens: (N, n_embed) f32, gauss: (N, num_experts) f32.

    Returns (router_output (N, E) f32, indices (N, top_k) i32).
    """
    N, e_in = x_tokens.shape
    # Lane-dense tile (multiple of 128), clamped so a tiny N doesn't allocate a
    # huge mostly-padding tile.
    tm = max(128, min(tm, pl.cdiv(N, 128) * 128))
    grid = (pl.cdiv(N, tm),)

    # Fuse the two projections and move everything to a token-on-lanes layout.
    w_fused_t = jnp.concatenate([w_route, w_noise], axis=1).T        # (2E, n_embed)
    b_fused_t = jnp.concatenate([b_route, b_noise], axis=1).T        # (2E, 1)
    x_t = x_tokens.T                                                 # (n_embed, N)
    g_t = gauss.T                                                    # (E, N)

    router_t, idx_t = pl.pallas_call(
        router_kernel,
        out_shape=(jax.ShapeDtypeStruct((NUM_EXPERTS, N), jnp.float32),
                   jax.ShapeDtypeStruct((TOP_K, N), jnp.int32)),
        grid_spec=pltpu.PrefetchScalarGridSpec(
            num_scalar_prefetch=0,
            grid=grid,
            in_specs=[
                pl.BlockSpec((e_in, tm), lambda i: (0, i)),                # x^T tile
                pl.BlockSpec((2 * NUM_EXPERTS, e_in), lambda i: (0, 0)),   # fused W^T
                pl.BlockSpec((2 * NUM_EXPERTS, 1), lambda i: (0, 0)),      # fused b^T
                pl.BlockSpec((NUM_EXPERTS, tm), lambda i: (0, i)),         # gauss^T tile
            ],
            out_specs=[
                pl.BlockSpec((NUM_EXPERTS, tm), lambda i: (0, i)),
                pl.BlockSpec((TOP_K, tm), lambda i: (0, i)),
            ],
        ),
        compiler_params=pltpu.CompilerParams(dimension_semantics=("parallel",)),
    )(x_t, w_fused_t, b_fused_t, g_t)

    return router_t.T, idx_t.T


if __name__ == "__main__":
    B, T = 2, 8
    N = B * T

    key = jax.random.PRNGKey(0)
    k_x, k_wr, k_br, k_wn, k_bn, k_noise = jax.random.split(key, 6)

    # Deterministic parameter init (shapes per nn.Linear(n_embed, num_experts)),
    # stored pre-transposed as (n_embed, num_experts).
    bound = 1.0 / jnp.sqrt(N_EMBED)
    w_route = jax.random.uniform(k_wr, (N_EMBED, NUM_EXPERTS), jnp.float32, -bound, bound)
    b_route = jax.random.uniform(k_br, (1, NUM_EXPERTS), jnp.float32, -bound, bound)
    w_noise = jax.random.uniform(k_wn, (N_EMBED, NUM_EXPERTS), jnp.float32, -bound, bound)
    b_noise = jax.random.uniform(k_bn, (1, NUM_EXPERTS), jnp.float32, -bound, bound)

    mh_output = jax.random.normal(k_x, (B, T, N_EMBED), jnp.float32)
    gauss = jax.random.normal(k_noise, (B, T, NUM_EXPERTS), jnp.float32)  # torch.randn_like

    x_tok = mh_output.reshape(N, N_EMBED)
    g_tok = gauss.reshape(N, NUM_EXPERTS)

    router_flat, idx_flat = noisy_topk_router(x_tok, w_route, b_route,
                                              w_noise, b_noise, g_tok)
    router_output = router_flat.reshape(B, T, NUM_EXPERTS)
    indices = idx_flat.reshape(B, T, TOP_K)
    jax.block_until_ready((router_output, indices))

    # Pure-JAX reference for sanity.
    logits = x_tok @ w_route + b_route
    noise_logits = x_tok @ w_noise + b_noise
    noisy = logits + g_tok * jax.nn.softplus(noise_logits)
    topv, topi = lax.top_k(noisy, TOP_K)
    rows = jnp.arange(N)[:, None]
    ref_sparse = jnp.full_like(noisy, -jnp.inf).at[rows, topi].set(topv)
    ref_router = jax.nn.softmax(ref_sparse, axis=-1)

    assert jnp.allclose(router_flat, ref_router, atol=1e-5), "router_output mismatch"
    # Note: tie-breaking picks the lowest expert index among exact-equal maxima;
    # with continuous Gaussian noise ties are measure-zero, so this matches top_k.
    assert jnp.array_equal(idx_flat, topi), "indices mismatch"
    assert jnp.allclose(jnp.sum(router_flat, axis=-1), 1.0, atol=1e-5)

    print("KERNEL_OK")
</pallas_src>

<mosaic_0001>
module attributes {stable_mosaic.version = 11 : i64} {
  func.func @router_kernel(%arg0: i32, %arg1: memref<32x128xf32, #tpu.memory_space<vmem>>, %arg2: memref<16x32xf32, #tpu.memory_space<vmem>>, %arg3: memref<16x1xf32, #tpu.memory_space<vmem>>, %arg4: memref<8x128xf32, #tpu.memory_space<vmem>>, %arg5: memref<8x128xf32, #tpu.memory_space<vmem>>, %arg6: memref<2x128xi32, #tpu.memory_space<vmem>>) attributes {dimension_semantics = [#tpu.dimension_semantics<parallel>], iteration_bounds = array<i64: 1>, scalar_prefetch = 0 : i64, scratch_operands = 0 : i64, tpu.core_type = #tpu.core_type<tc>, window_params = [{transform_indices = @transform_0, window_bounds = array<i64: 32, 128>}, {pipeline_mode = #tpu.pipeline_mode<synchronous>, transform_indices = @transform_1, window_bounds = array<i64: 16, 32>}, {pipeline_mode = #tpu.pipeline_mode<synchronous>, transform_indices = @transform_2, window_bounds = array<i64: 16, 1>}, {transform_indices = @transform_3, window_bounds = array<i64: 8, 128>}, {transform_indices = @transform_4, window_bounds = array<i64: 8, 128>}, {transform_indices = @transform_5, window_bounds = array<i64: 2, 128>}]} {
    %c0 = arith.constant 0 : index
    %c0_0 = arith.constant 0 : index
    %0 = vector.load %arg1[%c0, %c0_0] : memref<32x128xf32, #tpu.memory_space<vmem>>, vector<32x128xf32>
    %c0_1 = arith.constant 0 : index
    %c0_2 = arith.constant 0 : index
    %1 = vector.load %arg2[%c0_1, %c0_2] : memref<16x32xf32, #tpu.memory_space<vmem>>, vector<16x32xf32>
    %cst = arith.constant dense<0.000000e+00> : vector<16x128xf32>
    %2 = tpu.matmul %1, %0, %cst {dimension_numbers = #tpu.dot_dimension_numbers<[1], [0], [0], [1], [0, 0, 1, 1], [], []>} : vector<16x32xf32>, vector<32x128xf32>, vector<16x128xf32> -> vector<16x128xf32>
    %c0_3 = arith.constant 0 : index
    %c0_4 = arith.constant 0 : index
    %3 = vector.load %arg3[%c0_3, %c0_4] : memref<16x1xf32, #tpu.memory_space<vmem>>, vector<16x1xf32>
    %4 = vector.broadcast %3 : vector<16x1xf32> to vector<16x128xf32>
    %5 = arith.addf %2, %4 : vector<16x128xf32>
    %6 = vector.extract_strided_slice %5 {offsets = [0, 0], sizes = [8, 128], strides = [1, 1]} : vector<16x128xf32> to vector<8x128xf32>
    %7 = vector.extract_strided_slice %5 {offsets = [8, 0], sizes = [8, 128], strides = [1, 1]} : vector<16x128xf32> to vector<8x128xf32>
    %c0_5 = arith.constant 0 : index
    %c0_6 = arith.constant 0 : index
    %8 = vector.load %arg4[%c0_5, %c0_6] : memref<8x128xf32, #tpu.memory_space<vmem>>, vector<8x128xf32>
    %cst_7 = arith.constant 0.000000e+00 : f32
    %9 = vector.broadcast %cst_7 : f32 to vector<8x128xf32>
    %10 = arith.maximumf %7, %9 : vector<8x128xf32>
    %11 = vector.broadcast %cst_7 : f32 to vector<8x128xf32>
    %12 = arith.subf %7, %11 : vector<8x128xf32>
    %13 = arith.cmpf one, %12, %12 : vector<8x128xf32>
    %14 = vector.broadcast %cst_7 : f32 to vector<8x128xf32>
    %15 = arith.addf %7, %14 : vector<8x128xf32>
    %16 = math.absf %12 : vector<8x128xf32>
    %cst_8 = arith.constant 0.000000e+00 : f32
    %17 = vector.broadcast %cst_8 : f32 to vector<8x128xf32>
    %18 = arith.subf %17, %16 : vector<8x128xf32>
    %19 = math.exp %18 : vector<8x128xf32>
    %20 = math.log1p %19 : vector<8x128xf32>
    %21 = arith.addf %10, %20 : vector<8x128xf32>
    %22 = arith.select %13, %15, %21 : vector<8x128xi1>, vector<8x128xf32>
    %23 = arith.mulf %8, %22 : vector<8x128xf32>
    %24 = arith.addf %6, %23 : vector<8x128xf32>
    %25 = tpu.iota {dimensions = array<i32: 0>} : vector<8x128xi32>
    %cst_9 = arith.constant 0xFF800000 : f32
    %26 = vector.broadcast %cst_9 : f32 to vector<8x128xf32>
    %cst_10 = arith.constant dense<0xFF800000> : vector<128xf32>
    %27 = vector.multi_reduction <maximumf>, %24, %cst_10 [0] : vector<8x128xf32> to vector<128xf32>
    %28 = vector.shape_cast %27 : vector<128xf32> to vector<1x128xf32>
    %29 = vector.broadcast %28 : vector<1x128xf32> to vector<8x128xf32>
    %30 = arith.cmpf oeq, %24, %29 : vector<8x128xf32>
    %c8_i32 = arith.constant 8 : i32
    %31 = vector.broadcast %c8_i32 : i32 to vector<8x128xi32>
    %32 = arith.select %30, %25, %31 : vector<8x128xi1>, vector<8x128xi32>
    %cst_11 = arith.constant dense<2147483647> : vector<128xi32>
    %33 = vector.multi_reduction <minsi>, %32, %cst_11 [0] : vector<8x128xi32> to vector<128xi32>
    %34 = vector.shape_cast %33 : vector<128xi32> to vector<1x128xi32>
    %35 = vector.broadcast %34 : vector<1x128xi32> to vector<8x128xi32>
    %36 = arith.cmpi eq, %25, %35 : vector<8x128xi32>
    %37 = arith.select %36, %24, %26 : vector<8x128xi1>, vector<8x128xf32>
    %cst_12 = arith.constant 0xFF800000 : f32
    %38 = vector.broadcast %cst_12 : f32 to vector<8x128xf32>
    %39 = arith.select %36, %38, %24 : vector<8x128xi1>, vector<8x128xf32>
    %cst_13 = arith.constant dense<0xFF800000> : vector<128xf32>
    %40 = vector.multi_reduction <maximumf>, %39, %cst_13 [0] : vector<8x128xf32> to vector<128xf32>
    %41 = vector.shape_cast %40 : vector<128xf32> to vector<1x128xf32>
    %42 = vector.broadcast %41 : vector<1x128xf32> to vector<8x128xf32>
    %43 = arith.cmpf oeq, %39, %42 : vector<8x128xf32>
    %c8_i32_14 = arith.constant 8 : i32
    %44 = vector.broadcast %c8_i32_14 : i32 to vector<8x128xi32>
    %45 = arith.select %43, %25, %44 : vector<8x128xi1>, vector<8x128xi32>
    %cst_15 = arith.constant dense<2147483647> : vector<128xi32>
    %46 = vector.multi_reduction <minsi>, %45, %cst_15 [0] : vector<8x128xi32> to vector<128xi32>
    %47 = vector.shape_cast %46 : vector<128xi32> to vector<1x128xi32>
    %48 = vector.broadcast %47 : vector<1x128xi32> to vector<8x128xi32>
    %49 = arith.cmpi eq, %25, %48 : vector<8x128xi32>
    %50 = arith.select %49, %24, %37 : vector<8x128xi1>, vector<8x128xf32>
    %51 = tpu.concatenate %34, %47 in 0 : vector<1x128xi32>, vector<1x128xi32> -> vector<2x128xi32>
    %c0_16 = arith.constant 0 : index
    %c0_17 = arith.constant 0 : index
    %52 = vector.load %arg6[%c0_16, %c0_17] : memref<2x128xi32, #tpu.memory_space<vmem>>, vector<2x128xi32>
    tpu.vector_store %arg6[%c0_16, %c0_17], %51 {strides = array<i32>} : memref<2x128xi32, #tpu.memory_space<vmem>>, vector<2x128xi32>,
    %53 = vector.broadcast %28 : vector<1x128xf32> to vector<8x128xf32>
    %54 = arith.subf %50, %53 : vector<8x128xf32>
    %55 = math.exp %54 : vector<8x128xf32>
    %cst_18 = arith.constant dense<0.000000e+00> : vector<128xf32>
    %56 = vector.multi_reduction <add>, %55, %cst_18 [0] : vector<8x128xf32> to vector<128xf32>
    %57 = vector.shape_cast %56 : vector<128xf32> to vector<1x128xf32>
    %58 = vector.broadcast %57 : vector<1x128xf32> to vector<8x128xf32>
    %59 = arith.divf %55, %58 : vector<8x128xf32>
    %c0_19 = arith.constant 0 : index
    %c0_20 = arith.constant 0 : index
    %60 = vector.load %arg5[%c0_19, %c0_20] : memref<8x128xf32, #tpu.memory_space<vmem>>, vector<8x128xf32>
    tpu.vector_store %arg5[%c0_19, %c0_20], %59 {strides = array<i32>} : memref<8x128xf32, #tpu.memory_space<vmem>>, vector<8x128xf32>,
    return
  }
  func.func @transform_0(%arg0: i32) -> (i32, i32) {
    %c0_i32 = arith.constant 0 : i32
    %c0_i32_0 = arith.constant 0 : i32
    return %c0_i32, %arg0 : i32, i32
  }
  func.func @transform_1(%arg0: i32) -> (i32, i32) {
    %c0_i32 = arith.constant 0 : i32
    %c0_i32_0 = arith.constant 0 : i32
    %c0_i32_1 = arith.constant 0 : i32
    return %c0_i32, %c0_i32_0 : i32, i32
  }
  func.func @transform_2(%arg0: i32) -> (i32, i32) {
    %c0_i32 = arith.constant 0 : i32
    %c0_i32_0 = arith.constant 0 : i32
    %c0_i32_1 = arith.constant 0 : i32
    return %c0_i32, %c0_i32_0 : i32, i32
  }
  func.func @transform_3(%arg0: i32) -> (i32, i32) {
    %c0_i32 = arith.constant 0 : i32
    %c0_i32_0 = arith.constant 0 : i32
    return %c0_i32, %arg0 : i32, i32
  }
  func.func @transform_4(%arg0: i32) -> (i32, i32) {
    %c0_i32 = arith.constant 0 : i32
    %c0_i32_0 = arith.constant 0 : i32
    return %c0_i32, %arg0 : i32, i32
  }
  func.func @transform_5(%arg0: i32) -> (i32, i32) {
    %c0_i32 = arith.constant 0 : i32
    %c0_i32_0 = arith.constant 0 : i32
    return %c0_i32, %arg0 : i32, i32
  }
}

</mosaic_0001>

<llo_original>
// kernel: tpu_custom_call.1
$region0: #{tpu_custom_call.1}
  #allocation0 [shape = 'u32[]', space=smem, size = 0x4, offset = 0x4, fixed_abs, tag = 'smem constant byte address 0x4 - core index']
  #allocation1 [shape = 'u32[72,128]{1,0:T(1,128)}', space=vmem, size = 0x9000, scoped, tag = 'internal scratch']
  %s0 = inlined_call_operand.vmem [shape: f32[32,16], index: 0, kind: input, shape index: {}]
  %s1 = inlined_call_operand.vmem [shape: f32[16,32], index: 1, kind: input, shape index: {}]
  %s2 = inlined_call_operand.vmem [shape: f32[16,1], index: 2, kind: input, shape index: {}]
  %s3 = inlined_call_operand.vmem [shape: f32[8,16], index: 3, kind: input, shape index: {}]
  %s4 = inlined_call_operand.hbm [shape: f32[8,16], index: 4, kind: output, shape index: {0}]
  %s5 = inlined_call_operand.hbm [shape: s32[2,16], index: 5, kind: output, shape index: {1}]
  %6 = xla_tuple %s4, %s5
  %s7 = sld [smem:[#allocation0]]
  $region34: #{tpu_custom_call.1} parent=0
    _
  %s9 = ssub.s32 1, %s7
  %s10 = scalar_select 0, %s9, %s7
  $region1: #{tpu_custom_call.1} parent=0
    #allocation2 [shape = 'u8[4096]{0}', space=vmem, size = 0x1000, scoped, tag = 'output window, operand 0, single buffered']
    #allocation3 [shape = 's32[1]{0}', space=sflag, size = 0x4, scoped, tag = 'scoped memory for tpu_custom_call.1']
    #allocation4 [shape = 'u8[1024]{0}', space=vmem, size = 0x400, scoped, tag = 'output window, operand 1, single buffered']
    #allocation5 [shape = 's32[1]{0}', space=sflag, size = 0x4, scoped, tag = 'scoped memory for tpu_custom_call.1']
    %11 = vsyncpa [#allocation3], 0
    %12 = vsyncpa [#allocation5], 0
    // Predicated region
    $region2: #{tpu_custom_call.1} parent=1 // pred_check
      _
    $region3: #{tpu_custom_call.1} parent=1 // pred_check_branch
      %14 = sbr.rel (0) target = $region5
    $region4: #{tpu_custom_call.1} parent=1 // pred_region
      _
    $region5: #{tpu_custom_call.1} parent=1 // pred_fallthru
      _
    // Predicated region
    $region6: #{tpu_custom_call.1} parent=1 // pred_check
      _
    $region7: #{tpu_custom_call.1} parent=1 // pred_check_branch
      %16 = sbr.rel (0) target = $region9
    $region8: #{tpu_custom_call.1} parent=1 // pred_region
      _
    $region9: #{tpu_custom_call.1} parent=1 // pred_fallthru
      _
    // Predicated region
    $region10: #{tpu_custom_call.1} parent=1 // pred_check
      _
    $region11: #{tpu_custom_call.1} parent=1 // pred_check_branch
      %18 = sbr.rel (0) target = $region13
    $region12: #{tpu_custom_call.1} parent=1 // pred_region
      _
    $region13: #{tpu_custom_call.1} parent=1 // pred_fallthru
      _
    // Predicated region
    $region14: #{tpu_custom_call.1} parent=1 // pred_check
      _
    $region15: #{tpu_custom_call.1} parent=1 // pred_check_branch
      %20 = sbr.rel (0) target = $region17
    $region16: #{tpu_custom_call.1} parent=1 // pred_region
      _
    $region17: #{tpu_custom_call.1} parent=1 // pred_fallthru
      _
    %v21 = vld [vmem:[%s0] sm:$0xff]
    %v22 = vld [vmem:[%s0 + $0x8] sm:$0xff]
    %v23 = vld [vmem:[%s0 + $0x10] sm:$0xff]
    %v24 = vld [vmem:[%s0 + $0x18] sm:$0xff]
    %v25 = vld [vmem:[%s1] sm:$0xff]
    %v26 = vld [vmem:[%s1 + $0x8] sm:$0xff]
    %v27 = vld [vmem:[%s2] sm:$0xff]
    %v28 = vld [vmem:[%s2 + $0x8] sm:$0xff]
    %30 = vset.pattern.permute.xlu0 0
    %31 = vperm.xlu0 %30, %v27
    %v32 = vpop.permute.xlu0 %31
    %35 = vset.pattern.permute.xlu0 0
    %36 = vperm.xlu0 %35, %v28
    %v37 = vpop.permute.xlu0 %36
    %vm39 = vcmask 261120
    %v41 = vsel %vm39, %v25, 0
    %v44 = vsel %vm39, %v26, 0
    %46 = vmatpush.msra.mxu0 0.0
    %47 = vmatpush.msra.mxu0 0.0
    %48 = vmatpush.msra.mxu0 0.0
    %49 = vmatpush.msra.mxu0 0.0
    %50 = vmatpush.msra.mxu0 0.0
    %51 = vmatpush.msra.mxu0 0.0
    %52 = vmatpush.msra.mxu0 0.0
    %53 = vmatpush.msra.mxu0 0.0
    %54 = vmatpush.msra.mxu0 0.0
    %55 = vmatpush.msra.mxu0 0.0
    %56 = vmatpush.msra.mxu0 0.0
    %57 = vmatpush.msra.mxu0 0.0
    %58 = vmatpush.msra.mxu0 %v24
    %59 = vmatpush.msra.mxu0 %v23
    %60 = vmatpush.msra.mxu0 %v22
    %61 = vmatpush.msra.mxu0 %v21
    %62 = vmatmul.f32.gmra.mxu0 %v41
    %v63 = vpop.f32.mrf.mxu0
    %v64 = vadd.f32 %v32, %v63
    %65 = vmatmul.f32.gmra.mxu0 %v44
    %v66 = vpop.f32.mrf.mxu0
    %v67 = vadd.f32 %v37, %v66
    %68 = vdwg.mxu0
    %v69 = vld [vmem:[%s3] sm:$0xff]
    %v70 = vmax.f32 %v67, 0.0
    %vm71 = vcmp.ne.f32.partialorder %v67, %v67
    %v72 = vadd.f32 %v67, 0.0
    %v73 = vand.u32 2147483647, %v67
    %v74 = vsub.f32 0.0, %v73
    %v75 = vmul.f32 %v74, 1.442695
    %v76 = vpow.pop %v75
    %v77 = vadd.f32 %v76, 1.0
    %v78 = vlog2.pop %v77
    %v79 = vmul.f32 %v78, 0.6931472
    %v80 = vmul.f32 -0.5, %v76
    %v81 = vadd.f32 %v80, 1.0
    %v82 = vmul.f32 %v81, %v76
    %v83 = vand.u32 2147483647, %v76
    %vm84 = vcmp.lt.f32.partialorder %v83, 0.0004427343
    %v85 = vsel %vm84, %v82, %v79
    %v86 = vadd.f32 %v70, %v85
    %v87 = vsel %vm71, %v72, %v86
    %v88 = vmul.f32 %v69, %v87
    %v89 = vadd.f32 %v64, %v88
    %v90 = vlaneseq
    %v91 = vshrl.u32 %v90, 7
    %v92 = vrot.slane %v89, 4
    %v93 = vmax.f32 %v89, %v92
    %v94 = vrot.slane %v93, 2
    %v95 = vmax.f32 %v93, %v94
    %v96 = vrot.slane %v95, 1
    %v97 = vmax.f32 %v95, %v96
    %vm98 = vcmp.eq.f32.partialorder %v89, %v97
    %v99 = vsel %vm98, %v91, 8
    %v100 = vrot.slane %v99, 4
    %vm101 = vcmp.lt.s32.totalorder %v99, %v100
    %v102 = vsel %vm101, %v99, %v100
    %v103 = vrot.slane %v102, 2
    %vm104 = vcmp.lt.s32.totalorder %v102, %v103
    %v105 = vsel %vm104, %v102, %v103
    %v106 = vrot.slane %v105, 1
    %vm107 = vcmp.lt.s32.totalorder %v105, %v106
    %v108 = vsel %vm107, %v105, %v106
    %vm109 = vcmp.eq.s32.totalorder %v91, %v108
    %v110 = vsel %vm109, %v89, -inf
    %v111 = vsel %vm109, -inf, %v89
    %v112 = vrot.slane %v111, 4
    %v113 = vmax.f32 %v111, %v112
    %v114 = vrot.slane %v113, 2
    %v115 = vmax.f32 %v113, %v114
    %v116 = vrot.slane %v115, 1
    %v117 = vmax.f32 %v115, %v116
    %vm118 = vcmp.eq.f32.partialorder %v111, %v117
    %v119 = vsel %vm118, %v91, 8
    %v120 = vrot.slane %v119, 4
    %vm121 = vcmp.lt.s32.totalorder %v119, %v120
    %v122 = vsel %vm121, %v119, %v120
    %v123 = vrot.slane %v122, 2
    %vm124 = vcmp.lt.s32.totalorder %v122, %v123
    %v125 = vsel %vm124, %v122, %v123
    %v126 = vrot.slane %v125, 1
    %vm127 = vcmp.lt.s32.totalorder %v125, %v126
    %v128 = vsel %vm127, %v125, %v126
    %vm129 = vcmp.eq.s32.totalorder %v91, %v128
    %v130 = vsel %vm129, %v89, %v110
    %vm131 = vcmask 1040384
    %v132 = vsel %vm131, %v108, %v128
    %133 = vst [vmem:[#allocation4] sm:$0x3] %v132
    %v134 = vsub.f32 %v130, %v97
    %v135 = vmul.f32 %v134, 1.442695
    %v136 = vpow.pop %v135
    %v137 = vrot.slane %v136, 4
    %v138 = vadd.f32 %v136, %v137
    %v139 = vrot.slane %v138, 2
    %v140 = vadd.f32 %v138, %v139
    %v141 = vrot.slane %v140, 1
    %v142 = vadd.f32 %v140, %v141
    %v143 = vrcp.pop %v142
    %v144 = vmul.f32 %v142, %v143
    %v145 = vsub.f32 1.0, %v144
    %v146 = vmul.f32 %v143, %v145
    %v147 = vadd.f32 %v143, %v146
    %vm148 = vweird.f32 %v142
    %vm149 = vweird.f32 %v143
    %vm150 = vmor %vm148, %vm149
    %v151 = vsel %vm150, %v143, %v147
    %v152 = vand.u32 2147483647, %v142
    %vm153 = vcmp.eq.f32.partialorder %v152, 8.507059e+37
    %v154 = vand.u32 %v142, 2147483648
    %v155 = vor.u32 1.1754944e-38, %v154
    %v156 = vsel %vm153, %v155, %v151
    %v157 = vmul.f32 %v136, %v156
    %158 = vst [vmem:[#allocation2] sm:$0xff] %v157
    // Predicated region
    $region18: #{tpu_custom_call.1} parent=1 // pred_check
      _
    $region19: #{tpu_custom_call.1} parent=1 // pred_check_branch
      %160 = sbr.rel (0) target = $region21
    $region20: #{tpu_custom_call.1} parent=1 // pred_region
      %162 = vsyncadd [#allocation3], 0
      %s164 = sshll.u32 [#allocation2], 4
      %s165 = int_to_ptr.vmem [resolvable:$true] %s164
      %s166 = sshll.u32 %s4, 4
      %s167 = int_to_ptr.hbm [resolvable:$true] %s166
      %169 = dma.vmem_to_hbm [thread:$0]  %s165, 128, %s167, [#allocation3]
    $region21: #{tpu_custom_call.1} parent=1 // pred_fallthru
      _
    // Predicated region
    $region22: #{tpu_custom_call.1} parent=1 // pred_check
      _
    $region23: #{tpu_custom_call.1} parent=1 // pred_check_branch
      %171 = sbr.rel (0) target = $region25
    $region24: #{tpu_custom_call.1} parent=1 // pred_region
      %173 = vsyncadd [#allocation5], 0
      %s175 = sshll.u32 [#allocation4], 4
      %s176 = int_to_ptr.vmem [resolvable:$true] %s175
      %s177 = sshll.u32 %s5, 4
      %s178 = int_to_ptr.hbm [resolvable:$true] %s177
      %180 = dma.vmem_to_hbm [thread:$0]  %s176, 32, %s178, [#allocation5]
    $region25: #{tpu_custom_call.1} parent=1 // pred_fallthru
      _
    // Predicated region
    $region26: #{tpu_custom_call.1} parent=1 // pred_check
      _
    $region27: #{tpu_custom_call.1} parent=1 // pred_check_branch
      %182 = sbr.rel (0) target = $region29
    $region28: #{tpu_custom_call.1} parent=1 // pred_region
      %184 = dma.done [#allocation3], 128
    $region29: #{tpu_custom_call.1} parent=1 // pred_fallthru
      _
    // Predicated region
    $region30: #{tpu_custom_call.1} parent=1 // pred_check
      _
    $region31: #{tpu_custom_call.1} parent=1 // pred_check_branch
      %186 = sbr.rel (0) target = $region33
    $region32: #{tpu_custom_call.1} parent=1 // pred_region
      %188 = dma.done [#allocation5], 32
    $region33: #{tpu_custom_call.1} parent=1 // pred_fallthru
      _
    %189 = vsyncpa [#allocation3], 1
    %190 = vsyncpa [#allocation5], 1

</llo_original>
